<compile_context>
chip_gen: v5e
topology: v5e:2x2
jax: 0.10.0
libtpu: 0.0.40
codegen_flags: <defaults>
</compile_context>

<pallas_src>
import functools

import jax
import jax.numpy as jnp
from jax.experimental import pallas as pl
from jax.experimental.pallas import tpu as pltpu


# ---------------------------------------------------------------------------
# helpers
# ---------------------------------------------------------------------------
def _round_up(x, m):
    return ((x + m - 1) // m) * m


def _pad_to(x, shape, dtype):
    x = x.astype(dtype)
    if tuple(x.shape) == tuple(shape):
        return x
    pads = [(0, s - d) for s, d in zip(shape, x.shape)]
    return jnp.pad(x, pads)


# ---------------------------------------------------------------------------
# Fused whole-forward kernel (small/medium graphs: everything VMEM-resident)
# ---------------------------------------------------------------------------
def _fused_gnn_kernel(*refs, n_convs, orders):
    """refs = (a_hat, h0, w_in, b_in, w_0, b_0, ..., w_{n-1}, b_{n-1}, out).

    bf16 operands on the MXU path; f32 accumulation + bias/relu epilogue.
    """
    a_hat = refs[0][...]
    h = refs[1][...]
    w_in = refs[2][...]
    b_in = refs[3][...]
    out_ref = refs[-1]
    conv_refs = refs[4:-1]

    # input weighting: relu(h @ W_in + b_in); dropout is identity in eval.
    h = jnp.dot(h, w_in, preferred_element_type=jnp.float32) + b_in
    h = jnp.maximum(h, 0.0).astype(jnp.bfloat16)

    for i in range(n_convs):
        w = conv_refs[2 * i][...]
        b = conv_refs[2 * i + 1][...]
        if orders[i]:
            # transform first: A_hat @ (h @ W) -- the N^2-scaling aggregation
            # runs over the narrower feature dim.
            hw = jnp.dot(h, w, preferred_element_type=jnp.float32).astype(jnp.bfloat16)
            out = jnp.dot(a_hat, hw, preferred_element_type=jnp.float32) + b
        else:
            ah = jnp.dot(a_hat, h, preferred_element_type=jnp.float32).astype(jnp.bfloat16)
            out = jnp.dot(ah, w, preferred_element_type=jnp.float32) + b
        if i < n_convs - 1:
            h = jnp.maximum(out, 0.0).astype(jnp.bfloat16)
        else:
            out_ref[...] = out.astype(out_ref.dtype)


def _fused_vmem_bytes(n, feat_dim, h_dims):
    """Rough VMEM footprint of the fused kernel (padded operands + live f32)."""
    np_ = _round_up(n, 128)
    fp = _round_up(feat_dim, 128)
    dps = [_round_up(d, 128) for d in h_dims]
    total = np_ * np_ * 2 + np_ * fp * 2                  # a_hat + h0 (bf16)
    total += fp * dps[0] * 2 + dps[0] * 4                 # W_in + b_in
    for i in range(len(dps) - 1):
        total += dps[i] * dps[i + 1] * 2 + dps[i + 1] * 4
    widest = max([fp] + dps)
    total += 3 * np_ * widest * 4                         # live intermediates (f32)
    total += np_ * dps[-1] * 4                            # output
    return total


def gnn_forward_fused(params, a_hat, h):
    n, feat_dim = h.shape
    h_dims = [params["w_in"].shape[1]] + [w.shape[1] for w in params["conv_w"]]
    n_convs = len(params["conv_w"])

    np_ = _round_up(n, 128)
    fp = _round_up(feat_dim, 128)
    dps = [_round_up(d, 128) for d in h_dims]

    a_hat_p = _pad_to(a_hat, (np_, np_), jnp.bfloat16)
    h_p = _pad_to(h, (np_, fp), jnp.bfloat16)
    w_in_p = _pad_to(params["w_in"], (fp, dps[0]), jnp.bfloat16)
    b_in_p = _pad_to(params["b_in"].reshape(1, -1), (1, dps[0]), jnp.float32)

    conv_inputs = []
    orders = []
    for i in range(n_convs):
        w = params["conv_w"][i]
        b = params["conv_b"][i]
        din, dout = w.shape
        orders.append(dout <= din)
        conv_inputs.append(_pad_to(w, (dps[i], dps[i + 1]), jnp.bfloat16))
        conv_inputs.append(_pad_to(b.reshape(1, -1), (1, dps[i + 1]), jnp.float32))

    inputs = [a_hat_p, h_p, w_in_p, b_in_p] + conv_inputs
    in_specs = [pl.BlockSpec(x.shape, lambda i: (0, 0)) for x in inputs]
    out_shape = jax.ShapeDtypeStruct((np_, dps[-1]), jnp.float32)
    out_spec = pl.BlockSpec((np_, dps[-1]), lambda i: (0, 0))

    kernel = functools.partial(_fused_gnn_kernel, n_convs=n_convs, orders=tuple(orders))

    footprint = _fused_vmem_bytes(n, feat_dim, h_dims)
    vmem_limit = int(min(64 * 1024 * 1024, max(32 * 1024 * 1024, 2 * footprint)))

    out = pl.pallas_call(
        kernel,
        out_shape=out_shape,
        grid_spec=pltpu.PrefetchScalarGridSpec(
            num_scalar_prefetch=0,
            grid=(1,),
            in_specs=in_specs,
            out_specs=out_spec,
        ),
        compiler_params=pltpu.CompilerParams(
            dimension_semantics=("arbitrary",),
            vmem_limit_bytes=vmem_limit,
        ),
    )(*inputs)
    return out[:n, : h_dims[-1]]


# ---------------------------------------------------------------------------
# Generic tiled matmul (+bias +relu) kernels — large-graph fallback path
# ---------------------------------------------------------------------------
def _mm_kernel_accum_out(a_ref, b_ref, bias_ref, o_ref, *, apply_relu):
    """f32 output: accumulate directly into the (k-resident) output block."""
    k = pl.program_id(2)

    @pl.when(k == 0)
    def _init():
        o_ref[...] = jnp.zeros_like(o_ref)

    o_ref[...] += jnp.dot(a_ref[...], b_ref[...], preferred_element_type=jnp.float32)

    @pl.when(k == pl.num_programs(2) - 1)
    def _finalize():
        out = o_ref[...] + bias_ref[...]
        if apply_relu:
            out = jnp.maximum(out, 0.0)
        o_ref[...] = out


def _mm_kernel_scratch_acc(a_ref, b_ref, bias_ref, o_ref, acc_ref, *, apply_relu):
    """Narrow output dtype (bf16): keep a separate f32 accumulator scratch."""
    k = pl.program_id(2)

    @pl.when(k == 0)
    def _init():
        acc_ref[...] = jnp.zeros_like(acc_ref)

    acc_ref[...] += jnp.dot(a_ref[...], b_ref[...], preferred_element_type=jnp.float32)

    @pl.when(k == pl.num_programs(2) - 1)
    def _finalize():
        out = acc_ref[...] + bias_ref[...]
        if apply_relu:
            out = jnp.maximum(out, 0.0)
        o_ref[...] = out.astype(o_ref.dtype)


def _pick_row_tile(m, tm_pref):
    """Clamp row tile; ensure >=2 row tiles when M is big enough (v7x 2 TCs)."""
    tm = min(tm_pref, _round_up(m, 8))
    if m >= 256 and _round_up(m, tm) // tm < 2:
        tm = _round_up((m + 1) // 2, 8)
    return tm


def pallas_matmul(a, b, bias=None, apply_relu=False, *,
                  tm=512, tn=512, tk=512,
                  compute_dtype=jnp.bfloat16, out_dtype=jnp.float32):
    """out = relu?( a @ b + bias ), tiled for TPU.

    a: [M, K], b: [K, N], bias: [N] or None.  Operands are cast to bf16 for
    the MXU; accumulation and the bias/relu epilogue stay in f32.
    """
    M, K = a.shape
    K2, N = b.shape
    assert K == K2, (a.shape, b.shape)

    tm = _pick_row_tile(M, tm)
    tn = min(tn, _round_up(N, 128))
    tk = min(tk, _round_up(K, 128))

    Mp = _round_up(M, tm)
    Kp = _round_up(K, tk)
    Np = _round_up(N, tn)

    a_p = _pad_to(a, (Mp, Kp), compute_dtype)
    b_p = _pad_to(b, (Kp, Np), compute_dtype)
    if bias is None:
        bias_p = jnp.zeros((1, Np), jnp.float32)
    else:
        bias_p = _pad_to(bias.reshape(1, -1), (1, Np), jnp.float32)

    grid = (Mp // tm, Np // tn, Kp // tk)
    f32_out = jnp.dtype(out_dtype) == jnp.dtype(jnp.float32)

    if f32_out:
        kernel = functools.partial(_mm_kernel_accum_out, apply_relu=apply_relu)
        scratch_shapes = []
    else:
        kernel = functools.partial(_mm_kernel_scratch_acc, apply_relu=apply_relu)
        scratch_shapes = [pltpu.VMEM((tm, tn), jnp.float32)]

    itemsize = jnp.dtype(compute_dtype).itemsize
    out_itemsize = jnp.dtype(out_dtype).itemsize
    gi, gj, _ = grid
    cost = pl.CostEstimate(
        flops=2 * Mp * Np * Kp,
        transcendentals=0,
        bytes_accessed=(gj * Mp * Kp * itemsize + gi * Kp * Np * itemsize
                        + gi * Np * 4 + Mp * Np * out_itemsize),
    )

    # double-buffered inputs + output buffers + optional f32 scratch + bias
    need = (2 * (tm * tk + tk * tn) * itemsize
            + 2 * tm * tn * out_itemsize
            + (0 if f32_out else tm * tn * 4)
            + 2 * tn * 4)
    vmem_limit = int(min(64 * 1024 * 1024, max(32 * 1024 * 1024, 2 * need)))

    out = pl.pallas_call(
        kernel,
        out_shape=jax.ShapeDtypeStruct((Mp, Np), out_dtype),
        grid_spec=pltpu.PrefetchScalarGridSpec(
            num_scalar_prefetch=0,
            grid=grid,
            in_specs=[
                pl.BlockSpec((tm, tk), lambda i, j, k: (i, k)),
                pl.BlockSpec((tk, tn), lambda i, j, k: (k, j)),
                pl.BlockSpec((1, tn), lambda i, j, k: (0, j)),
            ],
            out_specs=pl.BlockSpec((tm, tn), lambda i, j, k: (i, j)),
            scratch_shapes=scratch_shapes,
        ),
        compiler_params=pltpu.CompilerParams(
            dimension_semantics=("parallel", "parallel", "arbitrary"),
            vmem_limit_bytes=vmem_limit,
        ),
        cost_estimate=cost,
    )(a_p, b_p, bias_p)

    if (Mp, Np) != (M, N):
        out = out[:M, :N]
    return out


def gcn_conv(a_hat, h, w, b, apply_relu, out_dtype=jnp.float32):
    """Fallback GCN layer: A_hat @ h @ W + b, matmul order minimizes FLOPs."""
    din, dout = w.shape
    if dout <= din:
        hw = pallas_matmul(h, w, out_dtype=jnp.bfloat16)
        # aggregation is HBM-bound: larger tk -> fewer, longer A_hat DMAs
        return pallas_matmul(a_hat, hw, bias=b, apply_relu=apply_relu,
                             out_dtype=out_dtype, tk=1024)
    ah = pallas_matmul(a_hat, h, out_dtype=jnp.bfloat16, tk=1024)
    return pallas_matmul(ah, w, bias=b, apply_relu=apply_relu, out_dtype=out_dtype)


# ---------------------------------------------------------------------------
# Module-level forward: fused when it fits in VMEM, tiled fallback otherwise
# ---------------------------------------------------------------------------
def gnn_forward(params, a_hat, h):
    h_dims = [params["w_in"].shape[1]] + [w.shape[1] for w in params["conv_w"]]
    if _fused_vmem_bytes(h.shape[0], h.shape[1], h_dims) <= 24 * 1024 * 1024:
        return gnn_forward_fused(params, a_hat, h)

    # large-graph fallback: layer-by-layer tiled matmuls, bf16 intermediates,
    # a_hat cast to bf16 once and threaded through the layer loop.
    a_hat_bf16 = a_hat.astype(jnp.bfloat16)
    x = pallas_matmul(h, params["w_in"], bias=params["b_in"], apply_relu=True,
                      out_dtype=jnp.bfloat16)
    n_convs = len(params["conv_w"])
    for i in range(n_convs - 1):
        x = gcn_conv(a_hat_bf16, x, params["conv_w"][i], params["conv_b"][i],
                     apply_relu=True, out_dtype=jnp.bfloat16)
    return gcn_conv(a_hat_bf16, x, params["conv_w"][-1], params["conv_b"][-1],
                    apply_relu=False, out_dtype=jnp.float32)


# ---------------------------------------------------------------------------
# Plain-JAX glue: parameters, adjacency normalization, reference forward
# ---------------------------------------------------------------------------
def init_params(key, feat_dim, h_dims):
    n_convs = len(h_dims) - 1
    keys = jax.random.split(key, 2 + 2 * n_convs)

    def glorot(k, fan_in, fan_out):
        limit = jnp.sqrt(6.0 / (fan_in + fan_out))
        return jax.random.uniform(k, (fan_in, fan_out), jnp.float32, -limit, limit)

    params = {
        "w_in": glorot(keys[0], feat_dim, h_dims[0]),
        "b_in": 0.05 * jax.random.normal(keys[1], (h_dims[0],), jnp.float32),
        "conv_w": [],
        "conv_b": [],
    }
    for i in range(n_convs):
        params["conv_w"].append(glorot(keys[2 + 2 * i], h_dims[i], h_dims[i + 1]))
        params["conv_b"].append(
            0.05 * jax.random.normal(keys[3 + 2 * i], (h_dims[i + 1],), jnp.float32))
    return params


def normalize_adjacency(adj):
    """A_hat = D^{-1/2} (A + I) D^{-1/2} (dense, float32)."""
    n = adj.shape[0]
    a = adj + jnp.eye(n, dtype=jnp.float32)
    deg = jnp.sum(a, axis=1)
    d_inv_sqrt = jnp.where(deg > 0, 1.0 / jnp.sqrt(deg), 0.0)
    return a * d_inv_sqrt[:, None] * d_inv_sqrt[None, :]


def ref_forward(params, a_hat, h):
    """Mirrors the kernel's bf16-compute / f32-accumulate data flow."""
    def mm(a, b):
        return jnp.dot(a.astype(jnp.bfloat16), b.astype(jnp.bfloat16),
                       preferred_element_type=jnp.float32)

    h = jnp.maximum(mm(h, params["w_in"]) + params["b_in"], 0.0)
    n = len(params["conv_w"])
    for i in range(n):
        w, b = params["conv_w"][i], params["conv_b"][i]
        din, dout = w.shape
        if dout <= din:
            out = mm(a_hat, mm(h, w).astype(jnp.bfloat16)) + b
        else:
            out = mm(mm(a_hat, h).astype(jnp.bfloat16), w) + b
        h = jnp.maximum(out, 0.0) if i < n - 1 else out
    return h


# ---------------------------------------------------------------------------
# Main
# ---------------------------------------------------------------------------
if __name__ == "__main__":
    key = jax.random.PRNGKey(0)
    k_feat, k_adj, k_param, k_a, k_b, k_bias = jax.random.split(key, 6)

    num_nodes = 256
    feat_dim = 64
    h_dims = [128, 128, 64]   # -> 2 GCN conv layers after input weighting

    # node features [N, feat_dim]
    h = jax.random.normal(k_feat, (num_nodes, feat_dim), jnp.float32)

    # random symmetric adjacency (no self loops), then GCN normalization
    upper = (jax.random.uniform(k_adj, (num_nodes, num_nodes)) < 0.05).astype(jnp.float32)
    upper = jnp.triu(upper, k=1)
    adj = upper + upper.T
    a_hat = normalize_adjacency(adj)

    params = init_params(k_param, feat_dim, h_dims)

    # fused whole-forward (single pallas_call at these shapes)
    fwd = jax.jit(gnn_forward)
    out = jax.block_until_ready(fwd(params, a_hat, h))

    assert out.shape == (num_nodes, h_dims[-1]), out.shape
    assert bool(jnp.all(jnp.isfinite(out)))

    ref = ref_forward(params, a_hat, h)
    max_err = float(jnp.max(jnp.abs(out - ref)))
    assert jnp.allclose(out, ref, atol=5e-2, rtol=5e-2), max_err

    # also exercise the large-graph tiled fallback kernels on a multi-tile grid
    a_t = 0.5 * jax.random.normal(k_a, (192, 320), jnp.float32)
    b_t = 0.5 * jax.random.normal(k_b, (320, 160), jnp.float32)
    bias_t = 0.1 * jax.random.normal(k_bias, (160,), jnp.float32)
    mm_ref = jnp.maximum(
        jnp.dot(a_t.astype(jnp.bfloat16), b_t.astype(jnp.bfloat16),
                preferred_element_type=jnp.float32) + bias_t, 0.0)
    mm_f32 = jax.block_until_ready(
        pallas_matmul(a_t, b_t, bias=bias_t, apply_relu=True,
                      tm=64, tn=128, tk=128, out_dtype=jnp.float32))
    mm_bf16 = jax.block_until_ready(
        pallas_matmul(a_t, b_t, bias=bias_t, apply_relu=True,
                      tm=64, tn=128, tk=128, out_dtype=jnp.bfloat16))
    assert jnp.allclose(mm_f32, mm_ref, atol=5e-2, rtol=5e-2)
    assert jnp.allclose(mm_bf16.astype(jnp.float32), mm_ref, atol=1.5e-1, rtol=5e-2)

    print("KERNEL_OK")
</pallas_src>

<mosaic_0001>
module attributes {stable_mosaic.version = 11 : i64} {
  func.func @_fused_gnn_kernel(%arg0: i32, %arg1: memref<256x256xbf16, #tpu.memory_space<vmem>>, %arg2: memref<256x128xbf16, #tpu.memory_space<vmem>>, %arg3: memref<128x128xbf16, #tpu.memory_space<vmem>>, %arg4: memref<1x128xf32, #tpu.memory_space<vmem>>, %arg5: memref<128x128xbf16, #tpu.memory_space<vmem>>, %arg6: memref<1x128xf32, #tpu.memory_space<vmem>>, %arg7: memref<128x128xbf16, #tpu.memory_space<vmem>>, %arg8: memref<1x128xf32, #tpu.memory_space<vmem>>, %arg9: memref<256x128xf32, #tpu.memory_space<vmem>>) attributes {dimension_semantics = [#tpu.dimension_semantics<arbitrary>], iteration_bounds = array<i64: 1>, scalar_prefetch = 0 : i64, scratch_operands = 0 : i64, tpu.core_type = #tpu.core_type<tc>, window_params = [{pipeline_mode = #tpu.pipeline_mode<synchronous>, transform_indices = @transform_0, window_bounds = array<i64: 256, 256>}, {pipeline_mode = #tpu.pipeline_mode<synchronous>, transform_indices = @transform_1, window_bounds = array<i64: 256, 128>}, {pipeline_mode = #tpu.pipeline_mode<synchronous>, transform_indices = @transform_2, window_bounds = array<i64: 128, 128>}, {pipeline_mode = #tpu.pipeline_mode<synchronous>, transform_indices = @transform_3, window_bounds = array<i64: 1, 128>}, {pipeline_mode = #tpu.pipeline_mode<synchronous>, transform_indices = @transform_4, window_bounds = array<i64: 128, 128>}, {pipeline_mode = #tpu.pipeline_mode<synchronous>, transform_indices = @transform_5, window_bounds = array<i64: 1, 128>}, {pipeline_mode = #tpu.pipeline_mode<synchronous>, transform_indices = @transform_6, window_bounds = array<i64: 128, 128>}, {pipeline_mode = #tpu.pipeline_mode<synchronous>, transform_indices = @transform_7, window_bounds = array<i64: 1, 128>}, {pipeline_mode = #tpu.pipeline_mode<synchronous>, transform_indices = @transform_8, window_bounds = array<i64: 256, 128>}]} {
    %c0 = arith.constant 0 : index
    %c0_0 = arith.constant 0 : index
    %0 = vector.load %arg1[%c0, %c0_0] : memref<256x256xbf16, #tpu.memory_space<vmem>>, vector<256x256xbf16>
    %c0_1 = arith.constant 0 : index
    %c0_2 = arith.constant 0 : index
    %1 = vector.load %arg2[%c0_1, %c0_2] : memref<256x128xbf16, #tpu.memory_space<vmem>>, vector<256x128xbf16>
    %c0_3 = arith.constant 0 : index
    %c0_4 = arith.constant 0 : index
    %2 = vector.load %arg3[%c0_3, %c0_4] : memref<128x128xbf16, #tpu.memory_space<vmem>>, vector<128x128xbf16>
    %c0_5 = arith.constant 0 : index
    %c0_6 = arith.constant 0 : index
    %3 = vector.load %arg4[%c0_5, %c0_6] : memref<1x128xf32, #tpu.memory_space<vmem>>, vector<1x128xf32>
    %cst = arith.constant dense<0.000000e+00> : vector<256x128xf32>
    %4 = tpu.matmul %1, %2, %cst {dimension_numbers = #tpu.dot_dimension_numbers<[1], [0], [0], [1], [0, 0, 1, 1], [], []>} : vector<256x128xbf16>, vector<128x128xbf16>, vector<256x128xf32> -> vector<256x128xf32>
    %5 = vector.broadcast %3 : vector<1x128xf32> to vector<256x128xf32>
    %6 = arith.addf %4, %5 : vector<256x128xf32>
    %cst_7 = arith.constant 0.000000e+00 : f32
    %7 = vector.broadcast %cst_7 : f32 to vector<256x128xf32>
    %8 = arith.maximumf %6, %7 : vector<256x128xf32>
    %9 = arith.truncf %8 : vector<256x128xf32> to vector<256x128xbf16>
    %c0_8 = arith.constant 0 : index
    %c0_9 = arith.constant 0 : index
    %10 = vector.load %arg5[%c0_8, %c0_9] : memref<128x128xbf16, #tpu.memory_space<vmem>>, vector<128x128xbf16>
    %c0_10 = arith.constant 0 : index
    %c0_11 = arith.constant 0 : index
    %11 = vector.load %arg6[%c0_10, %c0_11] : memref<1x128xf32, #tpu.memory_space<vmem>>, vector<1x128xf32>
    %cst_12 = arith.constant dense<0.000000e+00> : vector<256x128xf32>
    %12 = tpu.matmul %9, %10, %cst_12 {dimension_numbers = #tpu.dot_dimension_numbers<[1], [0], [0], [1], [0, 0, 1, 1], [], []>} : vector<256x128xbf16>, vector<128x128xbf16>, vector<256x128xf32> -> vector<256x128xf32>
    %13 = arith.truncf %12 : vector<256x128xf32> to vector<256x128xbf16>
    %cst_13 = arith.constant dense<0.000000e+00> : vector<256x128xf32>
    %14 = tpu.matmul %0, %13, %cst_13 {dimension_numbers = #tpu.dot_dimension_numbers<[1], [0], [0], [1], [0, 0, 1, 1], [], []>} : vector<256x256xbf16>, vector<256x128xbf16>, vector<256x128xf32> -> vector<256x128xf32>
    %15 = vector.broadcast %11 : vector<1x128xf32> to vector<256x128xf32>
    %16 = arith.addf %14, %15 : vector<256x128xf32>
    %cst_14 = arith.constant 0.000000e+00 : f32
    %17 = vector.broadcast %cst_14 : f32 to vector<256x128xf32>
    %18 = arith.maximumf %16, %17 : vector<256x128xf32>
    %19 = arith.truncf %18 : vector<256x128xf32> to vector<256x128xbf16>
    %c0_15 = arith.constant 0 : index
    %c0_16 = arith.constant 0 : index
    %20 = vector.load %arg7[%c0_15, %c0_16] : memref<128x128xbf16, #tpu.memory_space<vmem>>, vector<128x128xbf16>
    %c0_17 = arith.constant 0 : index
    %c0_18 = arith.constant 0 : index
    %21 = vector.load %arg8[%c0_17, %c0_18] : memref<1x128xf32, #tpu.memory_space<vmem>>, vector<1x128xf32>
    %cst_19 = arith.constant dense<0.000000e+00> : vector<256x128xf32>
    %22 = tpu.matmul %19, %20, %cst_19 {dimension_numbers = #tpu.dot_dimension_numbers<[1], [0], [0], [1], [0, 0, 1, 1], [], []>} : vector<256x128xbf16>, vector<128x128xbf16>, vector<256x128xf32> -> vector<256x128xf32>
    %23 = arith.truncf %22 : vector<256x128xf32> to vector<256x128xbf16>
    %cst_20 = arith.constant dense<0.000000e+00> : vector<256x128xf32>
    %24 = tpu.matmul %0, %23, %cst_20 {dimension_numbers = #tpu.dot_dimension_numbers<[1], [0], [0], [1], [0, 0, 1, 1], [], []>} : vector<256x256xbf16>, vector<256x128xbf16>, vector<256x128xf32> -> vector<256x128xf32>
    %25 = vector.broadcast %21 : vector<1x128xf32> to vector<256x128xf32>
    %26 = arith.addf %24, %25 : vector<256x128xf32>
    %c0_21 = arith.constant 0 : index
    %c0_22 = arith.constant 0 : index
    %27 = vector.load %arg9[%c0_21, %c0_22] : memref<256x128xf32, #tpu.memory_space<vmem>>, vector<256x128xf32>
    tpu.vector_store %arg9[%c0_21, %c0_22], %26 {strides = array<i32>} : memref<256x128xf32, #tpu.memory_space<vmem>>, vector<256x128xf32>,
    return
  }
  func.func @transform_0(%arg0: i32) -> (i32, i32) {
    %c0_i32 = arith.constant 0 : i32
    %c0_i32_0 = arith.constant 0 : i32
    %c0_i32_1 = arith.constant 0 : i32
    return %c0_i32, %c0_i32_0 : i32, i32
  }
  func.func @transform_1(%arg0: i32) -> (i32, i32) {
    %c0_i32 = arith.constant 0 : i32
    %c0_i32_0 = arith.constant 0 : i32
    %c0_i32_1 = arith.constant 0 : i32
    return %c0_i32, %c0_i32_0 : i32, i32
  }
  func.func @transform_2(%arg0: i32) -> (i32, i32) {
    %c0_i32 = arith.constant 0 : i32
    %c0_i32_0 = arith.constant 0 : i32
    %c0_i32_1 = arith.constant 0 : i32
    return %c0_i32, %c0_i32_0 : i32, i32
  }
  func.func @transform_3(%arg0: i32) -> (i32, i32) {
    %c0_i32 = arith.constant 0 : i32
    %c0_i32_0 = arith.constant 0 : i32
    %c0_i32_1 = arith.constant 0 : i32
    return %c0_i32, %c0_i32_0 : i32, i32
  }
  func.func @transform_4(%arg0: i32) -> (i32, i32) {
    %c0_i32 = arith.constant 0 : i32
    %c0_i32_0 = arith.constant 0 : i32
    %c0_i32_1 = arith.constant 0 : i32
    return %c0_i32, %c0_i32_0 : i32, i32
  }
  func.func @transform_5(%arg0: i32) -> (i32, i32) {
    %c0_i32 = arith.constant 0 : i32
    %c0_i32_0 = arith.constant 0 : i32
    %c0_i32_1 = arith.constant 0 : i32
    return %c0_i32, %c0_i32_0 : i32, i32
  }
  func.func @transform_6(%arg0: i32) -> (i32, i32) {
    %c0_i32 = arith.constant 0 : i32
    %c0_i32_0 = arith.constant 0 : i32
    %c0_i32_1 = arith.constant 0 : i32
    return %c0_i32, %c0_i32_0 : i32, i32
  }
  func.func @transform_7(%arg0: i32) -> (i32, i32) {
    %c0_i32 = arith.constant 0 : i32
    %c0_i32_0 = arith.constant 0 : i32
    %c0_i32_1 = arith.constant 0 : i32
    return %c0_i32, %c0_i32_0 : i32, i32
  }
  func.func @transform_8(%arg0: i32) -> (i32, i32) {
    %c0_i32 = arith.constant 0 : i32
    %c0_i32_0 = arith.constant 0 : i32
    %c0_i32_1 = arith.constant 0 : i32
    return %c0_i32, %c0_i32_0 : i32, i32
  }
}

</mosaic_0001>

<llo_original>
// kernel: gnn_forward.1
$region0: #{gnn_forward.1}
  #allocation0 [shape = 'u32[]', space=smem, size = 0x4, offset = 0x4, fixed_abs, tag = 'smem constant byte address 0x4 - core index']
  #allocation1 [shape = 'u32[72,128]{1,0:T(1,128)}', space=vmem, size = 0x9000, scoped, tag = 'internal scratch']
  %s0 = inlined_call_operand.vmem [shape: bf16[256,256], index: 0, kind: input, shape index: {}]
  %s1 = inlined_call_operand.vmem [shape: bf16[256,128], index: 1, kind: input, shape index: {}]
  %s2 = inlined_call_operand.vmem [shape: bf16[128,128], index: 2, kind: input, shape index: {}]
  %s3 = inlined_call_operand.vmem [shape: f32[1,128], index: 3, kind: input, shape index: {}]
  %s4 = inlined_call_operand.vmem [shape: bf16[128,128], index: 4, kind: input, shape index: {}]
  %s5 = inlined_call_operand.vmem [shape: f32[1,128], index: 5, kind: input, shape index: {}]
  %s6 = inlined_call_operand.vmem [shape: bf16[128,128], index: 6, kind: input, shape index: {}]
  %s7 = inlined_call_operand.vmem [shape: f32[1,128], index: 7, kind: input, shape index: {}]
  %s8 = inlined_call_operand.vmem [shape: f32[256,128], index: 8, kind: output, shape index: {}]
  %s9 = sld [smem:[#allocation0]]
  $region42: #{gnn_forward.1} parent=0
    _
  %s11 = ssub.s32 1, %s9
  %s12 = scalar_select 0, %s11, %s9
  // Predicated region
  $region2: #{gnn_forward.1} parent=0 // pred_check
    _
  $region3: #{gnn_forward.1} parent=0 // pred_check_branch
    %14 = sbr.rel (0) target = $region5
  $region4: #{gnn_forward.1} parent=0 // pred_region
    _
  $region5: #{gnn_forward.1} parent=0 // pred_fallthru
    _
  // Predicated region
  $region6: #{gnn_forward.1} parent=0 // pred_check
    _
  $region7: #{gnn_forward.1} parent=0 // pred_check_branch
    %16 = sbr.rel (0) target = $region9
  $region8: #{gnn_forward.1} parent=0 // pred_region
    _
  $region9: #{gnn_forward.1} parent=0 // pred_fallthru
    _
  // Predicated region
  $region10: #{gnn_forward.1} parent=0 // pred_check
    _
  $region11: #{gnn_forward.1} parent=0 // pred_check_branch
    %18 = sbr.rel (0) target = $region13
  $region12: #{gnn_forward.1} parent=0 // pred_region
    _
  $region13: #{gnn_forward.1} parent=0 // pred_fallthru
    _
  // Predicated region
  $region14: #{gnn_forward.1} parent=0 // pred_check
    _
  $region15: #{gnn_forward.1} parent=0 // pred_check_branch
    %20 = sbr.rel (0) target = $region17
  $region16: #{gnn_forward.1} parent=0 // pred_region
    _
  $region17: #{gnn_forward.1} parent=0 // pred_fallthru
    _
  // Predicated region
  $region18: #{gnn_forward.1} parent=0 // pred_check
    _
  $region19: #{gnn_forward.1} parent=0 // pred_check_branch
    %22 = sbr.rel (0) target = $region21
  $region20: #{gnn_forward.1} parent=0 // pred_region
    _
  $region21: #{gnn_forward.1} parent=0 // pred_fallthru
    _
  // Predicated region
  $region22: #{gnn_forward.1} parent=0 // pred_check
    _
  $region23: #{gnn_forward.1} parent=0 // pred_check_branch
    %24 = sbr.rel (0) target = $region25
  $region24: #{gnn_forward.1} parent=0 // pred_region
    _
  $region25: #{gnn_forward.1} parent=0 // pred_fallthru
    _
  // Predicated region
  $region26: #{gnn_forward.1} parent=0 // pred_check
    _
  $region27: #{gnn_forward.1} parent=0 // pred_check_branch
    %26 = sbr.rel (0) target = $region29
  $region28: #{gnn_forward.1} parent=0 // pred_region
    _
  $region29: #{gnn_forward.1} parent=0 // pred_fallthru
    _
  // Predicated region
  $region30: #{gnn_forward.1} parent=0 // pred_check
    _
  $region31: #{gnn_forward.1} parent=0 // pred_check_branch
    %28 = sbr.rel (0) target = $region33
  $region32: #{gnn_forward.1} parent=0 // pred_region
    _
  $region33: #{gnn_forward.1} parent=0 // pred_fallthru
    _
  %v29 = vld [vmem:[%s0] sm:$0xff]
  %v30 = vld [vmem:[%s0 + $0x8] sm:$0xff]
  %v31 = vld [vmem:[%s0 + $0x10] sm:$0xff]
  %v32 = vld [vmem:[%s0 + $0x18] sm:$0xff]
  %v33 = vld [vmem:[%s0 + $0x20] sm:$0xff]
  %v34 = vld [vmem:[%s0 + $0x28] sm:$0xff]
  %v35 = vld [vmem:[%s0 + $0x30] sm:$0xff]
  %v36 = vld [vmem:[%s0 + $0x38] sm:$0xff]
  %v37 = vld [vmem:[%s0 + $0x40] sm:$0xff]
  %v38 = vld [vmem:[%s0 + $0x48] sm:$0xff]
  %v39 = vld [vmem:[%s0 + $0x50] sm:$0xff]
  %v40 = vld [vmem:[%s0 + $0x58] sm:$0xff]
  %v41 = vld [vmem:[%s0 + $0x60] sm:$0xff]
  %v42 = vld [vmem:[%s0 + $0x68] sm:$0xff]
  %v43 = vld [vmem:[%s0 + $0x70] sm:$0xff]
  %v44 = vld [vmem:[%s0 + $0x78] sm:$0xff]
  %v45 = vld [vmem:[%s0 + $0x80] sm:$0xff]
  %v46 = vld [vmem:[%s0 + $0x88] sm:$0xff]
  %v47 = vld [vmem:[%s0 + $0x90] sm:$0xff]
  %v48 = vld [vmem:[%s0 + $0x98] sm:$0xff]
  %v49 = vld [vmem:[%s0 + $0xa0] sm:$0xff]
  %v50 = vld [vmem:[%s0 + $0xa8] sm:$0xff]
  %v51 = vld [vmem:[%s0 + $0xb0] sm:$0xff]
  %v52 = vld [vmem:[%s0 + $0xb8] sm:$0xff]
  %v53 = vld [vmem:[%s0 + $0xc0] sm:$0xff]
  %v54 = vld [vmem:[%s0 + $0xc8] sm:$0xff]
  %v55 = vld [vmem:[%s0 + $0xd0] sm:$0xff]
  %v56 = vld [vmem:[%s0 + $0xd8] sm:$0xff]
  %v57 = vld [vmem:[%s0 + $0xe0] sm:$0xff]
  %v58 = vld [vmem:[%s0 + $0xe8] sm:$0xff]
  %v59 = vld [vmem:[%s0 + $0xf0] sm:$0xff]
  %v60 = vld [vmem:[%s0 + $0xf8] sm:$0xff]
  %v61 = vld [vmem:[%s1] sm:$0xf]
  %v62 = vld [vmem:[%s1 + $0x4] sm:$0xf]
  %v63 = vld [vmem:[%s1 + $0x8] sm:$0xf]
  %v64 = vld [vmem:[%s1 + $0xc] sm:$0xf]
  %v65 = vld [vmem:[%s1 + $0x10] sm:$0xf]
  %v66 = vld [vmem:[%s1 + $0x14] sm:$0xf]
  %v67 = vld [vmem:[%s1 + $0x18] sm:$0xf]
  %v68 = vld [vmem:[%s1 + $0x1c] sm:$0xf]
  %v69 = vld [vmem:[%s1 + $0x20] sm:$0xf]
  %v70 = vld [vmem:[%s1 + $0x24] sm:$0xf]
  %v71 = vld [vmem:[%s1 + $0x28] sm:$0xf]
  %v72 = vld [vmem:[%s1 + $0x2c] sm:$0xf]
  %v73 = vld [vmem:[%s1 + $0x30] sm:$0xf]
  %v74 = vld [vmem:[%s1 + $0x34] sm:$0xf]
  %v75 = vld [vmem:[%s1 + $0x38] sm:$0xf]
  %v76 = vld [vmem:[%s1 + $0x3c] sm:$0xf]
  %v77 = vld [vmem:[%s1 + $0x40] sm:$0xf]
  %v78 = vld [vmem:[%s1 + $0x44] sm:$0xf]
  %v79 = vld [vmem:[%s1 + $0x48] sm:$0xf]
  %v80 = vld [vmem:[%s1 + $0x4c] sm:$0xf]
  %v81 = vld [vmem:[%s1 + $0x50] sm:$0xf]
  %v82 = vld [vmem:[%s1 + $0x54] sm:$0xf]
  %v83 = vld [vmem:[%s1 + $0x58] sm:$0xf]
  %v84 = vld [vmem:[%s1 + $0x5c] sm:$0xf]
  %v85 = vld [vmem:[%s1 + $0x60] sm:$0xf]
  %v86 = vld [vmem:[%s1 + $0x64] sm:$0xf]
  %v87 = vld [vmem:[%s1 + $0x68] sm:$0xf]
  %v88 = vld [vmem:[%s1 + $0x6c] sm:$0xf]
  %v89 = vld [vmem:[%s1 + $0x70] sm:$0xf]
  %v90 = vld [vmem:[%s1 + $0x74] sm:$0xf]
  %v91 = vld [vmem:[%s1 + $0x78] sm:$0xf]
  %v92 = vld [vmem:[%s1 + $0x7c] sm:$0xf]
  %v93 = vld [vmem:[%s2] sm:$0xf]
  %v94 = vld [vmem:[%s2 + $0x4] sm:$0xf]
  %v95 = vld [vmem:[%s2 + $0x8] sm:$0xf]
  %v96 = vld [vmem:[%s2 + $0xc] sm:$0xf]
  %v97 = vld [vmem:[%s2 + $0x10] sm:$0xf]
  %v98 = vld [vmem:[%s2 + $0x14] sm:$0xf]
  %v99 = vld [vmem:[%s2 + $0x18] sm:$0xf]
  %v100 = vld [vmem:[%s2 + $0x1c] sm:$0xf]
  %v101 = vld [vmem:[%s2 + $0x20] sm:$0xf]
  %v102 = vld [vmem:[%s2 + $0x24] sm:$0xf]
  %v103 = vld [vmem:[%s2 + $0x28] sm:$0xf]
  %v104 = vld [vmem:[%s2 + $0x2c] sm:$0xf]
  %v105 = vld [vmem:[%s2 + $0x30] sm:$0xf]
  %v106 = vld [vmem:[%s2 + $0x34] sm:$0xf]
  %v107 = vld [vmem:[%s2 + $0x38] sm:$0xf]
  %v108 = vld [vmem:[%s2 + $0x3c] sm:$0xf]
  %v109 = vld [vmem:[%s3] sm:$0x1]
  %v111 = vperm.slane %v109, 0
  %v145 = vunpack.c.l.b16 %v61
  %v146 = vunpack.c.l.b16 %v62
  %v147 = vunpack.c.l.b16 %v63
  %v148 = vunpack.c.l.b16 %v64
  %v149 = vunpack.c.l.b16 %v65
  %v150 = vunpack.c.l.b16 %v66
  %v151 = vunpack.c.l.b16 %v67
  %v152 = vunpack.c.l.b16 %v68
  %v153 = vunpack.c.l.b16 %v69
  %v154 = vunpack.c.l.b16 %v70
  %v155 = vunpack.c.l.b16 %v71
  %v156 = vunpack.c.l.b16 %v72
  %v157 = vunpack.c.l.b16 %v73
  %v158 = vunpack.c.l.b16 %v74
  %v159 = vunpack.c.l.b16 %v75
  %v160 = vunpack.c.l.b16 %v76
  %v161 = vunpack.c.l.b16 %v77
  %v162 = vunpack.c.l.b16 %v78
  %v163 = vunpack.c.l.b16 %v79
  %v164 = vunpack.c.l.b16 %v80
  %v165 = vunpack.c.l.b16 %v81
  %v166 = vunpack.c.l.b16 %v82
  %v167 = vunpack.c.l.b16 %v83
  %v168 = vunpack.c.l.b16 %v84
  %v169 = vunpack.c.l.b16 %v85
  %v170 = vunpack.c.l.b16 %v86
  %v171 = vunpack.c.l.b16 %v87
  %v172 = vunpack.c.l.b16 %v88
  %v173 = vunpack.c.l.b16 %v89
  %v174 = vunpack.c.l.b16 %v90
  %v175 = vunpack.c.l.b16 %v91
  %v176 = vunpack.c.l.b16 %v92
  %v177 = vpack.c.b16 %v146, %v145
  %v178 = vpack.c.b16 %v148, %v147
  %v179 = vpack.c.b16 %v150, %v149
  %v180 = vpack.c.b16 %v152, %v151
  %v181 = vpack.c.b16 %v154, %v153
  %v182 = vpack.c.b16 %v156, %v155
  %v183 = vpack.c.b16 %v158, %v157
  %v184 = vpack.c.b16 %v160, %v159
  %v185 = vpack.c.b16 %v162, %v161
  %v186 = vpack.c.b16 %v164, %v163
  %v187 = vpack.c.b16 %v166, %v165
  %v188 = vpack.c.b16 %v168, %v167
  %v189 = vpack.c.b16 %v170, %v169
  %v190 = vpack.c.b16 %v172, %v171
  %v191 = vpack.c.b16 %v174, %v173
  %v192 = vpack.c.b16 %v176, %v175
  %v225 = vunpack.c.l.b16 %v93
  %v226 = vunpack.c.l.b16 %v94
  %v227 = vunpack.c.l.b16 %v95
  %v228 = vunpack.c.l.b16 %v96
  %v229 = vunpack.c.l.b16 %v97
  %v230 = vunpack.c.l.b16 %v98
  %v231 = vunpack.c.l.b16 %v99
  %v232 = vunpack.c.l.b16 %v100
  %v233 = vunpack.c.l.b16 %v101
  %v234 = vunpack.c.l.b16 %v102
  %v235 = vunpack.c.l.b16 %v103
  %v236 = vunpack.c.l.b16 %v104
  %v237 = vunpack.c.l.b16 %v105
  %v238 = vunpack.c.l.b16 %v106
  %v239 = vunpack.c.l.b16 %v107
  %v240 = vunpack.c.l.b16 %v108
  %v241 = vpack.c.b16 %v226, %v225
  %v242 = vpack.c.b16 %v228, %v227
  %v243 = vpack.c.b16 %v230, %v229
  %v244 = vpack.c.b16 %v232, %v231
  %v245 = vpack.c.b16 %v234, %v233
  %v246 = vpack.c.b16 %v236, %v235
  %v247 = vpack.c.b16 %v238, %v237
  %v248 = vpack.c.b16 %v240, %v239
  %257 = vmatpush.bf16.msra.mxu0 %v248
  %258 = vmatpush.bf16.msra.mxu0 %v247
  %259 = vmatpush.bf16.msra.mxu0 %v246
  %260 = vmatpush.bf16.msra.mxu0 %v245
  %261 = vmatpush.bf16.msra.mxu0 %v244
  %262 = vmatpush.bf16.msra.mxu0 %v243
  %263 = vmatpush.bf16.msra.mxu0 %v242
  %264 = vmatpush.bf16.msra.mxu0 %v241
  %265 = vmatmul.bf16.gmra.mxu0 %v177
  %v266 = vpop.f32.mrf.mxu0
  %v267 = vadd.f32 %v111, %v266
  %v268 = vpop.f32.mrf.mxu0
  %v269 = vadd.f32 %v111, %v268
  %270 = vmatmul.bf16.gmra.mxu0 %v178
  %v271 = vpop.f32.mrf.mxu0
  %v272 = vadd.f32 %v111, %v271
  %v273 = vpop.f32.mrf.mxu0
  %v274 = vadd.f32 %v111, %v273
  %275 = vmatmul.bf16.gmra.mxu0 %v179
  %v276 = vpop.f32.mrf.mxu0
  %v277 = vadd.f32 %v111, %v276
  %v278 = vpop.f32.mrf.mxu0
  %v279 = vadd.f32 %v111, %v278
  %280 = vmatmul.bf16.gmra.mxu0 %v180
  %v281 = vpop.f32.mrf.mxu0
  %v282 = vadd.f32 %v111, %v281
  %v283 = vpop.f32.mrf.mxu0
  %v284 = vadd.f32 %v111, %v283
  %285 = vmatmul.bf16.gmra.mxu0 %v181
  %v286 = vpop.f32.mrf.mxu0
  %v287 = vadd.f32 %v111, %v286
  %v288 = vpop.f32.mrf.mxu0
  %v289 = vadd.f32 %v111, %v288
  %290 = vmatmul.bf16.gmra.mxu0 %v182
  %v291 = vpop.f32.mrf.mxu0
  %v292 = vadd.f32 %v111, %v291
  %v293 = vpop.f32.mrf.mxu0
  %v294 = vadd.f32 %v111, %v293
  %295 = vmatmul.bf16.gmra.mxu0 %v183
  %v296 = vpop.f32.mrf.mxu0
  %v297 = vadd.f32 %v111, %v296
  %v298 = vpop.f32.mrf.mxu0
  %v299 = vadd.f32 %v111, %v298
  %300 = vmatmul.bf16.gmra.mxu0 %v184
  %v301 = vpop.f32.mrf.mxu0
  %v302 = vadd.f32 %v111, %v301
  %v303 = vpop.f32.mrf.mxu0
  %v304 = vadd.f32 %v111, %v303
  %305 = vmatmul.bf16.gmra.mxu0 %v185
  %v306 = vpop.f32.mrf.mxu0
  %v307 = vadd.f32 %v111, %v306
  %v308 = vpop.f32.mrf.mxu0
  %v309 = vadd.f32 %v111, %v308
  %310 = vmatmul.bf16.gmra.mxu0 %v186
  %v311 = vpop.f32.mrf.mxu0
  %v312 = vadd.f32 %v111, %v311
  %v313 = vpop.f32.mrf.mxu0
  %v314 = vadd.f32 %v111, %v313
  %315 = vmatmul.bf16.gmra.mxu0 %v187
  %v316 = vpop.f32.mrf.mxu0
  %v317 = vadd.f32 %v111, %v316
  %v318 = vpop.f32.mrf.mxu0
  %v319 = vadd.f32 %v111, %v318
  %320 = vmatmul.bf16.gmra.mxu0 %v188
  %v321 = vpop.f32.mrf.mxu0
  %v322 = vadd.f32 %v111, %v321
  %v323 = vpop.f32.mrf.mxu0
  %v324 = vadd.f32 %v111, %v323
  %325 = vmatmul.bf16.gmra.mxu0 %v189
  %v326 = vpop.f32.mrf.mxu0
  %v327 = vadd.f32 %v111, %v326
  %v328 = vpop.f32.mrf.mxu0
  %v329 = vadd.f32 %v111, %v328
  %330 = vmatmul.bf16.gmra.mxu0 %v190
  %v331 = vpop.f32.mrf.mxu0
  %v332 = vadd.f32 %v111, %v331
  %v333 = vpop.f32.mrf.mxu0
  %v334 = vadd.f32 %v111, %v333
  %335 = vmatmul.bf16.gmra.mxu0 %v191
  %v336 = vpop.f32.mrf.mxu0
  %v337 = vadd.f32 %v111, %v336
  %v338 = vpop.f32.mrf.mxu0
  %v339 = vadd.f32 %v111, %v338
  %340 = vmatmul.bf16.gmra.mxu0 %v192
  %v341 = vpop.f32.mrf.mxu0
  %v342 = vadd.f32 %v111, %v341
  %v343 = vpop.f32.mrf.mxu0
  %v344 = vadd.f32 %v111, %v343
  %345 = vdwg.mxu0
  %v346 = vmax.f32 %v267, 0.0
  %v347 = vmax.f32 %v269, 0.0
  %v348 = vmax.f32 %v272, 0.0
  %v349 = vmax.f32 %v274, 0.0
  %v350 = vmax.f32 %v277, 0.0
  %v351 = vmax.f32 %v279, 0.0
  %v352 = vmax.f32 %v282, 0.0
  %v353 = vmax.f32 %v284, 0.0
  %v354 = vmax.f32 %v287, 0.0
  %v355 = vmax.f32 %v289, 0.0
  %v356 = vmax.f32 %v292, 0.0
  %v357 = vmax.f32 %v294, 0.0
  %v358 = vmax.f32 %v297, 0.0
  %v359 = vmax.f32 %v299, 0.0
  %v360 = vmax.f32 %v302, 0.0
  %v361 = vmax.f32 %v304, 0.0
  %v362 = vmax.f32 %v307, 0.0
  %v363 = vmax.f32 %v309, 0.0
  %v364 = vmax.f32 %v312, 0.0
  %v365 = vmax.f32 %v314, 0.0
  %v366 = vmax.f32 %v317, 0.0
  %v367 = vmax.f32 %v319, 0.0
  %v368 = vmax.f32 %v322, 0.0
  %v369 = vmax.f32 %v324, 0.0
  %v370 = vmax.f32 %v327, 0.0
  %v371 = vmax.f32 %v329, 0.0
  %v372 = vmax.f32 %v332, 0.0
  %v373 = vmax.f32 %v334, 0.0
  %v374 = vmax.f32 %v337, 0.0
  %v375 = vmax.f32 %v339, 0.0
  %v376 = vmax.f32 %v342, 0.0
  %v377 = vmax.f32 %v344, 0.0
  %v378 = vpack.c.bf16 %v347, %v346
  %v379 = vpack.c.bf16 %v349, %v348
  %v380 = vpack.c.bf16 %v351, %v350
  %v381 = vpack.c.bf16 %v353, %v352
  %v382 = vpack.c.bf16 %v355, %v354
  %v383 = vpack.c.bf16 %v357, %v356
  %v384 = vpack.c.bf16 %v359, %v358
  %v385 = vpack.c.bf16 %v361, %v360
  %v386 = vpack.c.bf16 %v363, %v362
  %v387 = vpack.c.bf16 %v365, %v364
  %v388 = vpack.c.bf16 %v367, %v366
  %v389 = vpack.c.bf16 %v369, %v368
  %v390 = vpack.c.bf16 %v371, %v370
  %v391 = vpack.c.bf16 %v373, %v372
  %v392 = vpack.c.bf16 %v375, %v374
  %v393 = vpack.c.bf16 %v377, %v376
  %v394 = vld [vmem:[%s4] sm:$0xf]
  %v395 = vld [vmem:[%s4 + $0x4] sm:$0xf]
  %v396 = vld [vmem:[%s4 + $0x8] sm:$0xf]
  %v397 = vld [vmem:[%s4 + $0xc] sm:$0xf]
  %v398 = vld [vmem:[%s4 + $0x10] sm:$0xf]
  %v399 = vld [vmem:[%s4 + $0x14] sm:$0xf]
  %v400 = vld [vmem:[%s4 + $0x18] sm:$0xf]
  %v401 = vld [vmem:[%s4 + $0x1c] sm:$0xf]
  %v402 = vld [vmem:[%s4 + $0x20] sm:$0xf]
  %v403 = vld [vmem:[%s4 + $0x24] sm:$0xf]
  %v404 = vld [vmem:[%s4 + $0x28] sm:$0xf]
  %v405 = vld [vmem:[%s4 + $0x2c] sm:$0xf]
  %v406 = vld [vmem:[%s4 + $0x30] sm:$0xf]
  %v407 = vld [vmem:[%s4 + $0x34] sm:$0xf]
  %v408 = vld [vmem:[%s4 + $0x38] sm:$0xf]
  %v409 = vld [vmem:[%s4 + $0x3c] sm:$0xf]
  %v410 = vld [vmem:[%s5] sm:$0x1]
  %v427 = vunpack.c.l.b16 %v394
  %v428 = vunpack.c.l.b16 %v395
  %v429 = vunpack.c.l.b16 %v396
  %v430 = vunpack.c.l.b16 %v397
  %v431 = vunpack.c.l.b16 %v398
  %v432 = vunpack.c.l.b16 %v399
  %v433 = vunpack.c.l.b16 %v400
  %v434 = vunpack.c.l.b16 %v401
  %v435 = vunpack.c.l.b16 %v402
  %v436 = vunpack.c.l.b16 %v403
  %v437 = vunpack.c.l.b16 %v404
  %v438 = vunpack.c.l.b16 %v405
  %v439 = vunpack.c.l.b16 %v406
  %v440 = vunpack.c.l.b16 %v407
  %v441 = vunpack.c.l.b16 %v408
  %v442 = vunpack.c.l.b16 %v409
  %v443 = vpack.c.b16 %v428, %v427
  %v444 = vpack.c.b16 %v430, %v429
  %v445 = vpack.c.b16 %v432, %v431
  %v446 = vpack.c.b16 %v434, %v433
  %v447 = vpack.c.b16 %v436, %v435
  %v448 = vpack.c.b16 %v438, %v437
  %v449 = vpack.c.b16 %v440, %v439
  %v450 = vpack.c.b16 %v442, %v441
  %459 = vmatpush.bf16.msra.mxu0 %v450
  %460 = vmatpush.bf16.msra.mxu0 %v449
  %461 = vmatpush.bf16.msra.mxu0 %v448
  %462 = vmatpush.bf16.msra.mxu0 %v447
  %463 = vmatpush.bf16.msra.mxu0 %v446
  %464 = vmatpush.bf16.msra.mxu0 %v445
  %465 = vmatpush.bf16.msra.mxu0 %v444
  %466 = vmatpush.bf16.msra.mxu0 %v443
  %467 = vmatmul.bf16.gmra.mxu0 %v378
  %v468 = vpop.f32.mrf.mxu0
  %v469 = vadd.f32 0.0, %v468
  %v470 = vpop.f32.mrf.mxu0
  %v471 = vadd.f32 0.0, %v470
  %472 = vmatmul.bf16.gmra.mxu0 %v379
  %v473 = vpop.f32.mrf.mxu0
  %v474 = vadd.f32 0.0, %v473
  %v475 = vpop.f32.mrf.mxu0
  %v476 = vadd.f32 0.0, %v475
  %477 = vmatmul.bf16.gmra.mxu0 %v380
  %v478 = vpop.f32.mrf.mxu0
  %v479 = vadd.f32 0.0, %v478
  %v480 = vpop.f32.mrf.mxu0
  %v481 = vadd.f32 0.0, %v480
  %482 = vmatmul.bf16.gmra.mxu0 %v381
  %v483 = vpop.f32.mrf.mxu0
  %v484 = vadd.f32 0.0, %v483
  %v485 = vpop.f32.mrf.mxu0
  %v486 = vadd.f32 0.0, %v485
  %487 = vmatmul.bf16.gmra.mxu0 %v382
  %v488 = vpop.f32.mrf.mxu0
  %v489 = vadd.f32 0.0, %v488
  %v490 = vpop.f32.mrf.mxu0
  %v491 = vadd.f32 0.0, %v490
  %492 = vmatmul.bf16.gmra.mxu0 %v383
  %v493 = vpop.f32.mrf.mxu0
  %v494 = vadd.f32 0.0, %v493
  %v495 = vpop.f32.mrf.mxu0
  %v496 = vadd.f32 0.0, %v495
  %497 = vmatmul.bf16.gmra.mxu0 %v384
  %v498 = vpop.f32.mrf.mxu0
  %v499 = vadd.f32 0.0, %v498
  %v500 = vpop.f32.mrf.mxu0
  %v501 = vadd.f32 0.0, %v500
  %502 = vmatmul.bf16.gmra.mxu0 %v385
  %v503 = vpop.f32.mrf.mxu0
  %v504 = vadd.f32 0.0, %v503
  %v505 = vpop.f32.mrf.mxu0
  %v506 = vadd.f32 0.0, %v505
  %507 = vmatmul.bf16.gmra.mxu0 %v386
  %v508 = vpop.f32.mrf.mxu0
  %v509 = vadd.f32 0.0, %v508
  %v510 = vpop.f32.mrf.mxu0
  %v511 = vadd.f32 0.0, %v510
  %512 = vmatmul.bf16.gmra.mxu0 %v387
  %v513 = vpop.f32.mrf.mxu0
  %v514 = vadd.f32 0.0, %v513
  %v515 = vpop.f32.mrf.mxu0
  %v516 = vadd.f32 0.0, %v515
  %517 = vmatmul.bf16.gmra.mxu0 %v388
  %v518 = vpop.f32.mrf.mxu0
  %v519 = vadd.f32 0.0, %v518
  %v520 = vpop.f32.mrf.mxu0
  %v521 = vadd.f32 0.0, %v520
  %522 = vmatmul.bf16.gmra.mxu0 %v389
  %v523 = vpop.f32.mrf.mxu0
  %v524 = vadd.f32 0.0, %v523
  %v525 = vpop.f32.mrf.mxu0
  %v526 = vadd.f32 0.0, %v525
  %527 = vmatmul.bf16.gmra.mxu0 %v390
  %v528 = vpop.f32.mrf.mxu0
  %v529 = vadd.f32 0.0, %v528
  %v530 = vpop.f32.mrf.mxu0
  %v531 = vadd.f32 0.0, %v530
  %532 = vmatmul.bf16.gmra.mxu0 %v391
  %v533 = vpop.f32.mrf.mxu0
  %v534 = vadd.f32 0.0, %v533
  %v535 = vpop.f32.mrf.mxu0
  %v536 = vadd.f32 0.0, %v535
  %537 = vmatmul.bf16.gmra.mxu0 %v392
  %v538 = vpop.f32.mrf.mxu0
  %v539 = vadd.f32 0.0, %v538
  %v540 = vpop.f32.mrf.mxu0
  %v541 = vadd.f32 0.0, %v540
  %542 = vmatmul.bf16.gmra.mxu0 %v393
  %v543 = vpop.f32.mrf.mxu0
  %v544 = vadd.f32 0.0, %v543
  %v545 = vpop.f32.mrf.mxu0
  %v546 = vadd.f32 0.0, %v545
  %547 = vdwg.mxu0
  %v548 = vpack.c.bf16 %v471, %v469
  %v549 = vpack.c.bf16 %v476, %v474
  %v550 = vpack.c.bf16 %v481, %v479
  %v551 = vpack.c.bf16 %v486, %v484
  %v552 = vpack.c.bf16 %v491, %v489
  %v553 = vpack.c.bf16 %v496, %v494
  %v554 = vpack.c.bf16 %v501, %v499
  %v555 = vpack.c.bf16 %v506, %v504
  %v556 = vpack.c.bf16 %v511, %v509
  %v557 = vpack.c.bf16 %v516, %v514
  %v558 = vpack.c.bf16 %v521, %v519
  %v559 = vpack.c.bf16 %v526, %v524
  %v560 = vpack.c.bf16 %v531, %v529
  %v561 = vpack.c.bf16 %v536, %v534
  %v562 = vpack.c.bf16 %v541, %v539
  %v563 = vpack.c.bf16 %v546, %v544
  %v565 = vperm.slane %v410, 0
  %v599 = vunpack.c.l.b16 %v29
  %v600 = vunpack.c.h.b16 %v29
  %v601 = vunpack.c.l.b16 %v30
  %v602 = vunpack.c.h.b16 %v30
  %v603 = vunpack.c.l.b16 %v31
  %v604 = vunpack.c.h.b16 %v31
  %v605 = vunpack.c.l.b16 %v32
  %v606 = vunpack.c.h.b16 %v32
  %v607 = vunpack.c.l.b16 %v33
  %v608 = vunpack.c.h.b16 %v33
  %v609 = vunpack.c.l.b16 %v34
  %v610 = vunpack.c.h.b16 %v34
  %v611 = vunpack.c.l.b16 %v35
  %v612 = vunpack.c.h.b16 %v35
  %v613 = vunpack.c.l.b16 %v36
  %v614 = vunpack.c.h.b16 %v36
  %v615 = vunpack.c.l.b16 %v37
  %v616 = vunpack.c.h.b16 %v37
  %v617 = vunpack.c.l.b16 %v38
  %v618 = vunpack.c.h.b16 %v38
  %v619 = vunpack.c.l.b16 %v39
  %v620 = vunpack.c.h.b16 %v39
  %v621 = vunpack.c.l.b16 %v40
  %v622 = vunpack.c.h.b16 %v40
  %v623 = vunpack.c.l.b16 %v41
  %v624 = vunpack.c.h.b16 %v41
  %v625 = vunpack.c.l.b16 %v42
  %v626 = vunpack.c.h.b16 %v42
  %v627 = vunpack.c.l.b16 %v43
  %v628 = vunpack.c.h.b16 %v43
  %v629 = vunpack.c.l.b16 %v44
  %v630 = vunpack.c.h.b16 %v44
  %v631 = vunpack.c.l.b16 %v45
  %v632 = vunpack.c.h.b16 %v45
  %v633 = vunpack.c.l.b16 %v46
  %v634 = vunpack.c.h.b16 %v46
  %v635 = vunpack.c.l.b16 %v47
  %v636 = vunpack.c.h.b16 %v47
  %v637 = vunpack.c.l.b16 %v48
  %v638 = vunpack.c.h.b16 %v48
  %v639 = vunpack.c.l.b16 %v49
  %v640 = vunpack.c.h.b16 %v49
  %v641 = vunpack.c.l.b16 %v50
  %v642 = vunpack.c.h.b16 %v50
  %v643 = vunpack.c.l.b16 %v51
  %v644 = vunpack.c.h.b16 %v51
  %v645 = vunpack.c.l.b16 %v52
  %v646 = vunpack.c.h.b16 %v52
  %v647 = vunpack.c.l.b16 %v53
  %v648 = vunpack.c.h.b16 %v53
  %v649 = vunpack.c.l.b16 %v54
  %v650 = vunpack.c.h.b16 %v54
  %v651 = vunpack.c.l.b16 %v55
  %v652 = vunpack.c.h.b16 %v55
  %v653 = vunpack.c.l.b16 %v56
  %v654 = vunpack.c.h.b16 %v56
  %v655 = vunpack.c.l.b16 %v57
  %v656 = vunpack.c.h.b16 %v57
  %v657 = vunpack.c.l.b16 %v58
  %v658 = vunpack.c.h.b16 %v58
  %v659 = vunpack.c.l.b16 %v59
  %v660 = vunpack.c.h.b16 %v59
  %v661 = vunpack.c.l.b16 %v60
  %v662 = vunpack.c.h.b16 %v60
  %v663 = vpack.c.b16 %v601, %v599
  %v664 = vpack.c.b16 %v602, %v600
  %v665 = vpack.c.b16 %v605, %v603
  %v666 = vpack.c.b16 %v606, %v604
  %v667 = vpack.c.b16 %v609, %v607
  %v668 = vpack.c.b16 %v610, %v608
  %v669 = vpack.c.b16 %v613, %v611
  %v670 = vpack.c.b16 %v614, %v612
  %v671 = vpack.c.b16 %v617, %v615
  %v672 = vpack.c.b16 %v618, %v616
  %v673 = vpack.c.b16 %v621, %v619
  %v674 = vpack.c.b16 %v622, %v620
  %v675 = vpack.c.b16 %v625, %v623
  %v676 = vpack.c.b16 %v626, %v624
  %v677 = vpack.c.b16 %v629, %v627
  %v678 = vpack.c.b16 %v630, %v628
  %v679 = vpack.c.b16 %v633, %v631
  %v680 = vpack.c.b16 %v634, %v632
  %v681 = vpack.c.b16 %v637, %v635
  %v682 = vpack.c.b16 %v638, %v636
  %v683 = vpack.c.b16 %v641, %v639
  %v684 = vpack.c.b16 %v642, %v640
  %v685 = vpack.c.b16 %v645, %v643
  %v686 = vpack.c.b16 %v646, %v644
  %v687 = vpack.c.b16 %v649, %v647
  %v688 = vpack.c.b16 %v650, %v648
  %v689 = vpack.c.b16 %v653, %v651
  %v690 = vpack.c.b16 %v654, %v652
  %v691 = vpack.c.b16 %v657, %v655
  %v692 = vpack.c.b16 %v658, %v656
  %v693 = vpack.c.b16 %v661, %v659
  %v694 = vpack.c.b16 %v662, %v660
  %727 = vmatpush.bf16.msra.mxu0 %v555
  %728 = vmatpush.bf16.msra.mxu0 %v554
  %729 = vmatpush.bf16.msra.mxu0 %v553
  %730 = vmatpush.bf16.msra.mxu0 %v552
  %731 = vmatpush.bf16.msra.mxu0 %v551
  %732 = vmatpush.bf16.msra.mxu0 %v550
  %733 = vmatpush.bf16.msra.mxu0 %v549
  %734 = vmatpush.bf16.msra.mxu0 %v548
  %735 = vmatmul.bf16.gmra.mxu0 %v663
  %v736 = vpop.f32.mrf.mxu0
  %v737 = vadd.f32 %v565, %v736
  %v738 = vpop.f32.mrf.mxu0
  %v739 = vadd.f32 %v565, %v738
  %740 = vmatmul.bf16.gmra.mxu0 %v665
  %v741 = vpop.f32.mrf.mxu0
  %v742 = vadd.f32 %v565, %v741
  %v743 = vpop.f32.mrf.mxu0
  %v744 = vadd.f32 %v565, %v743
  %745 = vmatmul.bf16.gmra.mxu0 %v667
  %v746 = vpop.f32.mrf.mxu0
  %v747 = vadd.f32 %v565, %v746
  %v748 = vpop.f32.mrf.mxu0
  %v749 = vadd.f32 %v565, %v748
  %750 = vmatmul.bf16.gmra.mxu0 %v669
  %v751 = vpop.f32.mrf.mxu0
  %v752 = vadd.f32 %v565, %v751
  %v753 = vpop.f32.mrf.mxu0
  %v754 = vadd.f32 %v565, %v753
  %755 = vmatmul.bf16.gmra.mxu0 %v671
  %v756 = vpop.f32.mrf.mxu0
  %v757 = vadd.f32 %v565, %v756
  %v758 = vpop.f32.mrf.mxu0
  %v759 = vadd.f32 %v565, %v758
  %760 = vmatmul.bf16.gmra.mxu0 %v673
  %v761 = vpop.f32.mrf.mxu0
  %v762 = vadd.f32 %v565, %v761
  %v763 = vpop.f32.mrf.mxu0
  %v764 = vadd.f32 %v565, %v763
  %765 = vmatmul.bf16.gmra.mxu0 %v675
  %v766 = vpop.f32.mrf.mxu0
  %v767 = vadd.f32 %v565, %v766
  %v768 = vpop.f32.mrf.mxu0
  %v769 = vadd.f32 %v565, %v768
  %770 = vmatmul.bf16.gmra.mxu0 %v677
  %v771 = vpop.f32.mrf.mxu0
  %v772 = vadd.f32 %v565, %v771
  %v773 = vpop.f32.mrf.mxu0
  %v774 = vadd.f32 %v565, %v773
  %775 = vmatmul.bf16.gmra.mxu0 %v679
  %v776 = vpop.f32.mrf.mxu0
  %v777 = vadd.f32 %v565, %v776
  %v778 = vpop.f32.mrf.mxu0
  %v779 = vadd.f32 %v565, %v778
  %780 = vmatmul.bf16.gmra.mxu0 %v681
  %v781 = vpop.f32.mrf.mxu0
  %v782 = vadd.f32 %v565, %v781
  %v783 = vpop.f32.mrf.mxu0
  %v784 = vadd.f32 %v565, %v783
  %785 = vmatmul.bf16.gmra.mxu0 %v683
  %v786 = vpop.f32.mrf.mxu0
  %v787 = vadd.f32 %v565, %v786
  %v788 = vpop.f32.mrf.mxu0
  %v789 = vadd.f32 %v565, %v788
  %790 = vmatmul.bf16.gmra.mxu0 %v685
  %v791 = vpop.f32.mrf.mxu0
  %v792 = vadd.f32 %v565, %v791
  %v793 = vpop.f32.mrf.mxu0
  %v794 = vadd.f32 %v565, %v793
  %795 = vmatmul.bf16.gmra.mxu0 %v687
  %v796 = vpop.f32.mrf.mxu0
  %v797 = vadd.f32 %v565, %v796
  %v798 = vpop.f32.mrf.mxu0
  %v799 = vadd.f32 %v565, %v798
  %800 = vmatmul.bf16.gmra.mxu0 %v689
  %v801 = vpop.f32.mrf.mxu0
  %v802 = vadd.f32 %v565, %v801
  %v803 = vpop.f32.mrf.mxu0
  %v804 = vadd.f32 %v565, %v803
  %805 = vmatmul.bf16.gmra.mxu0 %v691
  %v806 = vpop.f32.mrf.mxu0
  %v807 = vadd.f32 %v565, %v806
  %v808 = vpop.f32.mrf.mxu0
  %v809 = vadd.f32 %v565, %v808
  %810 = vmatmul.bf16.gmra.mxu0 %v693
  %v811 = vpop.f32.mrf.mxu0
  %v812 = vadd.f32 %v565, %v811
  %v813 = vpop.f32.mrf.mxu0
  %v814 = vadd.f32 %v565, %v813
  %815 = vdwg.mxu0
  %816 = vmatpush.bf16.msra.mxu0 %v563
  %817 = vmatpush.bf16.msra.mxu0 %v562
  %818 = vmatpush.bf16.msra.mxu0 %v561
  %819 = vmatpush.bf16.msra.mxu0 %v560
  %820 = vmatpush.bf16.msra.mxu0 %v559
  %821 = vmatpush.bf16.msra.mxu0 %v558
  %822 = vmatpush.bf16.msra.mxu0 %v557
  %823 = vmatpush.bf16.msra.mxu0 %v556
  %824 = vmatmul.bf16.gmra.mxu0 %v664
  %v825 = vpop.f32.mrf.mxu0
  %v826 = vadd.f32 %v737, %v825
  %v827 = vpop.f32.mrf.mxu0
  %v828 = vadd.f32 %v739, %v827
  %829 = vmatmul.bf16.gmra.mxu0 %v666
  %v830 = vpop.f32.mrf.mxu0
  %v831 = vadd.f32 %v742, %v830
  %v832 = vpop.f32.mrf.mxu0
  %v833 = vadd.f32 %v744, %v832
  %834 = vmatmul.bf16.gmra.mxu0 %v668
  %v835 = vpop.f32.mrf.mxu0
  %v836 = vadd.f32 %v747, %v835
  %v837 = vpop.f32.mrf.mxu0
  %v838 = vadd.f32 %v749, %v837
  %839 = vmatmul.bf16.gmra.mxu0 %v670
  %v840 = vpop.f32.mrf.mxu0
  %v841 = vadd.f32 %v752, %v840
  %v842 = vpop.f32.mrf.mxu0
  %v843 = vadd.f32 %v754, %v842
  %844 = vmatmul.bf16.gmra.mxu0 %v672
  %v845 = vpop.f32.mrf.mxu0
  %v846 = vadd.f32 %v757, %v845
  %v847 = vpop.f32.mrf.mxu0
  %v848 = vadd.f32 %v759, %v847
  %849 = vmatmul.bf16.gmra.mxu0 %v674
  %v850 = vpop.f32.mrf.mxu0
  %v851 = vadd.f32 %v762, %v850
  %v852 = vpop.f32.mrf.mxu0
  %v853 = vadd.f32 %v764, %v852
  %854 = vmatmul.bf16.gmra.mxu0 %v676
  %v855 = vpop.f32.mrf.mxu0
  %v856 = vadd.f32 %v767, %v855
  %v857 = vpop.f32.mrf.mxu0
  %v858 = vadd.f32 %v769, %v857
  %859 = vmatmul.bf16.gmra.mxu0 %v678
  %v860 = vpop.f32.mrf.mxu0
  %v861 = vadd.f32 %v772, %v860
  %v862 = vpop.f32.mrf.mxu0
  %v863 = vadd.f32 %v774, %v862
  %864 = vmatmul.bf16.gmra.mxu0 %v680
  %v865 = vpop.f32.mrf.mxu0
  %v866 = vadd.f32 %v777, %v865
  %v867 = vpop.f32.mrf.mxu0
  %v868 = vadd.f32 %v779, %v867
  %869 = vmatmul.bf16.gmra.mxu0 %v682
  %v870 = vpop.f32.mrf.mxu0
  %v871 = vadd.f32 %v782, %v870
  %v872 = vpop.f32.mrf.mxu0
  %v873 = vadd.f32 %v784, %v872
  %874 = vmatmul.bf16.gmra.mxu0 %v684
  %v875 = vpop.f32.mrf.mxu0
  %v876 = vadd.f32 %v787, %v875
  %v877 = vpop.f32.mrf.mxu0
  %v878 = vadd.f32 %v789, %v877
  %879 = vmatmul.bf16.gmra.mxu0 %v686
  %v880 = vpop.f32.mrf.mxu0
  %v881 = vadd.f32 %v792, %v880
  %v882 = vpop.f32.mrf.mxu0
  %v883 = vadd.f32 %v794, %v882
  %884 = vmatmul.bf16.gmra.mxu0 %v688
  %v885 = vpop.f32.mrf.mxu0
  %v886 = vadd.f32 %v797, %v885
  %v887 = vpop.f32.mrf.mxu0
  %v888 = vadd.f32 %v799, %v887
  %889 = vmatmul.bf16.gmra.mxu0 %v690
  %v890 = vpop.f32.mrf.mxu0
  %v891 = vadd.f32 %v802, %v890
  %v892 = vpop.f32.mrf.mxu0
  %v893 = vadd.f32 %v804, %v892
  %894 = vmatmul.bf16.gmra.mxu0 %v692
  %v895 = vpop.f32.mrf.mxu0
  %v896 = vadd.f32 %v807, %v895
  %v897 = vpop.f32.mrf.mxu0
  %v898 = vadd.f32 %v809, %v897
  %899 = vmatmul.bf16.gmra.mxu0 %v694
  %v900 = vpop.f32.mrf.mxu0
  %v901 = vadd.f32 %v812, %v900
  %v902 = vpop.f32.mrf.mxu0
  %v903 = vadd.f32 %v814, %v902
  %904 = vdwg.mxu0
  %v905 = vmax.f32 %v826, 0.0
  %v906 = vmax.f32 %v828, 0.0
  %v907 = vmax.f32 %v831, 0.0
  %v908 = vmax.f32 %v833, 0.0
  %v909 = vmax.f32 %v836, 0.0
  %v910 = vmax.f32 %v838, 0.0
  %v911 = vmax.f32 %v841, 0.0
  %v912 = vmax.f32 %v843, 0.0
  %v913 = vmax.f32 %v846, 0.0
  %v914 = vmax.f32 %v848, 0.0
  %v915 = vmax.f32 %v851, 0.0
  %v916 = vmax.f32 %v853, 0.0
  %v917 = vmax.f32 %v856, 0.0
  %v918 = vmax.f32 %v858, 0.0
  %v919 = vmax.f32 %v861, 0.0
  %v920 = vmax.f32 %v863, 0.0
  %v921 = vmax.f32 %v866, 0.0
  %v922 = vmax.f32 %v868, 0.0
  %v923 = vmax.f32 %v871, 0.0
  %v924 = vmax.f32 %v873, 0.0
  %v925 = vmax.f32 %v876, 0.0
  %v926 = vmax.f32 %v878, 0.0
  %v927 = vmax.f32 %v881, 0.0
  %v928 = vmax.f32 %v883, 0.0
  %v929 = vmax.f32 %v886, 0.0
  %v930 = vmax.f32 %v888, 0.0
  %v931 = vmax.f32 %v891, 0.0
  %v932 = vmax.f32 %v893, 0.0
  %v933 = vmax.f32 %v896, 0.0
  %v934 = vmax.f32 %v898, 0.0
  %v935 = vmax.f32 %v901, 0.0
  %v936 = vmax.f32 %v903, 0.0
  %v937 = vpack.c.bf16 %v906, %v905
  %v938 = vpack.c.bf16 %v908, %v907
  %v939 = vpack.c.bf16 %v910, %v909
  %v940 = vpack.c.bf16 %v912, %v911
  %v941 = vpack.c.bf16 %v914, %v913
  %v942 = vpack.c.bf16 %v916, %v915
  %v943 = vpack.c.bf16 %v918, %v917
  %v944 = vpack.c.bf16 %v920, %v919
  %v945 = vpack.c.bf16 %v922, %v921
  %v946 = vpack.c.bf16 %v924, %v923
  %v947 = vpack.c.bf16 %v926, %v925
  %v948 = vpack.c.bf16 %v928, %v927
  %v949 = vpack.c.bf16 %v930, %v929
  %v950 = vpack.c.bf16 %v932, %v931
  %v951 = vpack.c.bf16 %v934, %v933
  %v952 = vpack.c.bf16 %v936, %v935
  %v953 = vld [vmem:[%s6] sm:$0xf]
  %v954 = vld [vmem:[%s6 + $0x4] sm:$0xf]
  %v955 = vld [vmem:[%s6 + $0x8] sm:$0xf]
  %v956 = vld [vmem:[%s6 + $0xc] sm:$0xf]
  %v957 = vld [vmem:[%s6 + $0x10] sm:$0xf]
  %v958 = vld [vmem:[%s6 + $0x14] sm:$0xf]
  %v959 = vld [vmem:[%s6 + $0x18] sm:$0xf]
  %v960 = vld [vmem:[%s6 + $0x1c] sm:$0xf]
  %v961 = vld [vmem:[%s6 + $0x20] sm:$0xf]
  %v962 = vld [vmem:[%s6 + $0x24] sm:$0xf]
  %v963 = vld [vmem:[%s6 + $0x28] sm:$0xf]
  %v964 = vld [vmem:[%s6 + $0x2c] sm:$0xf]
  %v965 = vld [vmem:[%s6 + $0x30] sm:$0xf]
  %v966 = vld [vmem:[%s6 + $0x34] sm:$0xf]
  %v967 = vld [vmem:[%s6 + $0x38] sm:$0xf]
  %v968 = vld [vmem:[%s6 + $0x3c] sm:$0xf]
  %v969 = vld [vmem:[%s7] sm:$0x1]
  %v986 = vunpack.c.l.b16 %v953
  %v987 = vunpack.c.l.b16 %v954
  %v988 = vunpack.c.l.b16 %v955
  %v989 = vunpack.c.l.b16 %v956
  %v990 = vunpack.c.l.b16 %v957
  %v991 = vunpack.c.l.b16 %v958
  %v992 = vunpack.c.l.b16 %v959
  %v993 = vunpack.c.l.b16 %v960
  %v994 = vunpack.c.l.b16 %v961
  %v995 = vunpack.c.l.b16 %v962
  %v996 = vunpack.c.l.b16 %v963
  %v997 = vunpack.c.l.b16 %v964
  %v998 = vunpack.c.l.b16 %v965
  %v999 = vunpack.c.l.b16 %v966
  %v1000 = vunpack.c.l.b16 %v967
  %v1001 = vunpack.c.l.b16 %v968
  %v1002 = vpack.c.b16 %v987, %v986
  %v1003 = vpack.c.b16 %v989, %v988
  %v1004 = vpack.c.b16 %v991, %v990
  %v1005 = vpack.c.b16 %v993, %v992
  %v1006 = vpack.c.b16 %v995, %v994
  %v1007 = vpack.c.b16 %v997, %v996
  %v1008 = vpack.c.b16 %v999, %v998
  %v1009 = vpack.c.b16 %v1001, %v1000
  %1018 = vmatpush.bf16.msra.mxu0 %v1009
  %1019 = vmatpush.bf16.msra.mxu0 %v1008
  %1020 = vmatpush.bf16.msra.mxu0 %v1007
  %1021 = vmatpush.bf16.msra.mxu0 %v1006
  %1022 = vmatpush.bf16.msra.mxu0 %v1005
  %1023 = vmatpush.bf16.msra.mxu0 %v1004
  %1024 = vmatpush.bf16.msra.mxu0 %v1003
  %1025 = vmatpush.bf16.msra.mxu0 %v1002
  %1026 = vmatmul.bf16.gmra.mxu0 %v937
  %v1027 = vpop.f32.mrf.mxu0
  %v1028 = vadd.f32 0.0, %v1027
  %v1029 = vpop.f32.mrf.mxu0
  %v1030 = vadd.f32 0.0, %v1029
  %1031 = vmatmul.bf16.gmra.mxu0 %v938
  %v1032 = vpop.f32.mrf.mxu0
  %v1033 = vadd.f32 0.0, %v1032
  %v1034 = vpop.f32.mrf.mxu0
  %v1035 = vadd.f32 0.0, %v1034
  %1036 = vmatmul.bf16.gmra.mxu0 %v939
  %v1037 = vpop.f32.mrf.mxu0
  %v1038 = vadd.f32 0.0, %v1037
  %v1039 = vpop.f32.mrf.mxu0
  %v1040 = vadd.f32 0.0, %v1039
  %1041 = vmatmul.bf16.gmra.mxu0 %v940
  %v1042 = vpop.f32.mrf.mxu0
  %v1043 = vadd.f32 0.0, %v1042
  %v1044 = vpop.f32.mrf.mxu0
  %v1045 = vadd.f32 0.0, %v1044
  %1046 = vmatmul.bf16.gmra.mxu0 %v941
  %v1047 = vpop.f32.mrf.mxu0
  %v1048 = vadd.f32 0.0, %v1047
  %v1049 = vpop.f32.mrf.mxu0
  %v1050 = vadd.f32 0.0, %v1049
  %1051 = vmatmul.bf16.gmra.mxu0 %v942
  %v1052 = vpop.f32.mrf.mxu0
  %v1053 = vadd.f32 0.0, %v1052
  %v1054 = vpop.f32.mrf.mxu0
  %v1055 = vadd.f32 0.0, %v1054
  %1056 = vmatmul.bf16.gmra.mxu0 %v943
  %v1057 = vpop.f32.mrf.mxu0
  %v1058 = vadd.f32 0.0, %v1057
  %v1059 = vpop.f32.mrf.mxu0
  %v1060 = vadd.f32 0.0, %v1059
  %1061 = vmatmul.bf16.gmra.mxu0 %v944
  %v1062 = vpop.f32.mrf.mxu0
  %v1063 = vadd.f32 0.0, %v1062
  %v1064 = vpop.f32.mrf.mxu0
  %v1065 = vadd.f32 0.0, %v1064
  %1066 = vmatmul.bf16.gmra.mxu0 %v945
  %v1067 = vpop.f32.mrf.mxu0
  %v1068 = vadd.f32 0.0, %v1067
  %v1069 = vpop.f32.mrf.mxu0
  %v1070 = vadd.f32 0.0, %v1069
  %1071 = vmatmul.bf16.gmra.mxu0 %v946
  %v1072 = vpop.f32.mrf.mxu0
  %v1073 = vadd.f32 0.0, %v1072
  %v1074 = vpop.f32.mrf.mxu0
  %v1075 = vadd.f32 0.0, %v1074
  %1076 = vmatmul.bf16.gmra.mxu0 %v947
  %v1077 = vpop.f32.mrf.mxu0
  %v1078 = vadd.f32 0.0, %v1077
  %v1079 = vpop.f32.mrf.mxu0
  %v1080 = vadd.f32 0.0, %v1079
  %1081 = vmatmul.bf16.gmra.mxu0 %v948
  %v1082 = vpop.f32.mrf.mxu0
  %v1083 = vadd.f32 0.0, %v1082
  %v1084 = vpop.f32.mrf.mxu0
  %v1085 = vadd.f32 0.0, %v1084
  %1086 = vmatmul.bf16.gmra.mxu0 %v949
  %v1087 = vpop.f32.mrf.mxu0
  %v1088 = vadd.f32 0.0, %v1087
  %v1089 = vpop.f32.mrf.mxu0
  %v1090 = vadd.f32 0.0, %v1089
  %1091 = vmatmul.bf16.gmra.mxu0 %v950
  %v1092 = vpop.f32.mrf.mxu0
  %v1093 = vadd.f32 0.0, %v1092
  %v1094 = vpop.f32.mrf.mxu0
  %v1095 = vadd.f32 0.0, %v1094
  %1096 = vmatmul.bf16.gmra.mxu0 %v951
  %v1097 = vpop.f32.mrf.mxu0
  %v1098 = vadd.f32 0.0, %v1097
  %v1099 = vpop.f32.mrf.mxu0
  %v1100 = vadd.f32 0.0, %v1099
  %1101 = vmatmul.bf16.gmra.mxu0 %v952
  %v1102 = vpop.f32.mrf.mxu0
  %v1103 = vadd.f32 0.0, %v1102
  %v1104 = vpop.f32.mrf.mxu0
  %v1105 = vadd.f32 0.0, %v1104
  %1106 = vdwg.mxu0
  %v1107 = vpack.c.bf16 %v1030, %v1028
  %v1108 = vpack.c.bf16 %v1035, %v1033
  %v1109 = vpack.c.bf16 %v1040, %v1038
  %v1110 = vpack.c.bf16 %v1045, %v1043
  %v1111 = vpack.c.bf16 %v1050, %v1048
  %v1112 = vpack.c.bf16 %v1055, %v1053
  %v1113 = vpack.c.bf16 %v1060, %v1058
  %v1114 = vpack.c.bf16 %v1065, %v1063
  %v1115 = vpack.c.bf16 %v1070, %v1068
  %v1116 = vpack.c.bf16 %v1075, %v1073
  %v1117 = vpack.c.bf16 %v1080, %v1078
  %v1118 = vpack.c.bf16 %v1085, %v1083
  %v1119 = vpack.c.bf16 %v1090, %v1088
  %v1120 = vpack.c.bf16 %v1095, %v1093
  %v1121 = vpack.c.bf16 %v1100, %v1098
  %v1122 = vpack.c.bf16 %v1105, %v1103
  %v1124 = vperm.slane %v969, 0
  %1126 = vmatpush.bf16.msra.mxu0 %v1114
  %1127 = vmatpush.bf16.msra.mxu0 %v1113
  %1128 = vmatpush.bf16.msra.mxu0 %v1112
  %1129 = vmatpush.bf16.msra.mxu0 %v1111
  %1130 = vmatpush.bf16.msra.mxu0 %v1110
  %1131 = vmatpush.bf16.msra.mxu0 %v1109
  %1132 = vmatpush.bf16.msra.mxu0 %v1108
  %1133 = vmatpush.bf16.msra.mxu0 %v1107
  %1134 = vmatmul.bf16.gmra.mxu0 %v663
  %v1135 = vpop.f32.mrf.mxu0
  %v1136 = vadd.f32 %v1124, %v1135
  %v1137 = vpop.f32.mrf.mxu0
  %v1138 = vadd.f32 %v1124, %v1137
  %1139 = vmatmul.bf16.gmra.mxu0 %v665
  %v1140 = vpop.f32.mrf.mxu0
  %v1141 = vadd.f32 %v1124, %v1140
  %v1142 = vpop.f32.mrf.mxu0
  %v1143 = vadd.f32 %v1124, %v1142
  %1144 = vmatmul.bf16.gmra.mxu0 %v667
  %v1145 = vpop.f32.mrf.mxu0
  %v1146 = vadd.f32 %v1124, %v1145
  %v1147 = vpop.f32.mrf.mxu0
  %v1148 = vadd.f32 %v1124, %v1147
  %1149 = vmatmul.bf16.gmra.mxu0 %v669
  %v1150 = vpop.f32.mrf.mxu0
  %v1151 = vadd.f32 %v1124, %v1150
  %v1152 = vpop.f32.mrf.mxu0
  %v1153 = vadd.f32 %v1124, %v1152
  %1154 = vmatmul.bf16.gmra.mxu0 %v671
  %v1155 = vpop.f32.mrf.mxu0
  %v1156 = vadd.f32 %v1124, %v1155
  %v1157 = vpop.f32.mrf.mxu0
  %v1158 = vadd.f32 %v1124, %v1157
  %1159 = vmatmul.bf16.gmra.mxu0 %v673
  %v1160 = vpop.f32.mrf.mxu0
  %v1161 = vadd.f32 %v1124, %v1160
  %v1162 = vpop.f32.mrf.mxu0
  %v1163 = vadd.f32 %v1124, %v1162
  %1164 = vmatmul.bf16.gmra.mxu0 %v675
  %v1165 = vpop.f32.mrf.mxu0
  %v1166 = vadd.f32 %v1124, %v1165
  %v1167 = vpop.f32.mrf.mxu0
  %v1168 = vadd.f32 %v1124, %v1167
  %1169 = vmatmul.bf16.gmra.mxu0 %v677
  %v1170 = vpop.f32.mrf.mxu0
  %v1171 = vadd.f32 %v1124, %v1170
  %v1172 = vpop.f32.mrf.mxu0
  %v1173 = vadd.f32 %v1124, %v1172
  %1174 = vmatmul.bf16.gmra.mxu0 %v679
  %v1175 = vpop.f32.mrf.mxu0
  %v1176 = vadd.f32 %v1124, %v1175
  %v1177 = vpop.f32.mrf.mxu0
  %v1178 = vadd.f32 %v1124, %v1177
  %1179 = vmatmul.bf16.gmra.mxu0 %v681
  %v1180 = vpop.f32.mrf.mxu0
  %v1181 = vadd.f32 %v1124, %v1180
  %v1182 = vpop.f32.mrf.mxu0
  %v1183 = vadd.f32 %v1124, %v1182
  %1184 = vmatmul.bf16.gmra.mxu0 %v683
  %v1185 = vpop.f32.mrf.mxu0
  %v1186 = vadd.f32 %v1124, %v1185
  %v1187 = vpop.f32.mrf.mxu0
  %v1188 = vadd.f32 %v1124, %v1187
  %1189 = vmatmul.bf16.gmra.mxu0 %v685
  %v1190 = vpop.f32.mrf.mxu0
  %v1191 = vadd.f32 %v1124, %v1190
  %v1192 = vpop.f32.mrf.mxu0
  %v1193 = vadd.f32 %v1124, %v1192
  %1194 = vmatmul.bf16.gmra.mxu0 %v687
  %v1195 = vpop.f32.mrf.mxu0
  %v1196 = vadd.f32 %v1124, %v1195
  %v1197 = vpop.f32.mrf.mxu0
  %v1198 = vadd.f32 %v1124, %v1197
  %1199 = vmatmul.bf16.gmra.mxu0 %v689
  %v1200 = vpop.f32.mrf.mxu0
  %v1201 = vadd.f32 %v1124, %v1200
  %v1202 = vpop.f32.mrf.mxu0
  %v1203 = vadd.f32 %v1124, %v1202
  %1204 = vmatmul.bf16.gmra.mxu0 %v691
  %v1205 = vpop.f32.mrf.mxu0
  %v1206 = vadd.f32 %v1124, %v1205
  %v1207 = vpop.f32.mrf.mxu0
  %v1208 = vadd.f32 %v1124, %v1207
  %1209 = vmatmul.bf16.gmra.mxu0 %v693
  %v1210 = vpop.f32.mrf.mxu0
  %v1211 = vadd.f32 %v1124, %v1210
  %v1212 = vpop.f32.mrf.mxu0
  %v1213 = vadd.f32 %v1124, %v1212
  %1214 = vdwg.mxu0
  %1215 = vmatpush.bf16.msra.mxu0 %v1122
  %1216 = vmatpush.bf16.msra.mxu0 %v1121
  %1217 = vmatpush.bf16.msra.mxu0 %v1120
  %1218 = vmatpush.bf16.msra.mxu0 %v1119
  %1219 = vmatpush.bf16.msra.mxu0 %v1118
  %1220 = vmatpush.bf16.msra.mxu0 %v1117
  %1221 = vmatpush.bf16.msra.mxu0 %v1116
  %1222 = vmatpush.bf16.msra.mxu0 %v1115
  %1223 = vmatmul.bf16.gmra.mxu0 %v664
  %v1224 = vpop.f32.mrf.mxu0
  %v1225 = vadd.f32 %v1136, %v1224
  %v1226 = vpop.f32.mrf.mxu0
  %v1227 = vadd.f32 %v1138, %v1226
  %1228 = vmatmul.bf16.gmra.mxu0 %v666
  %v1229 = vpop.f32.mrf.mxu0
  %v1230 = vadd.f32 %v1141, %v1229
  %v1231 = vpop.f32.mrf.mxu0
  %v1232 = vadd.f32 %v1143, %v1231
  %1233 = vmatmul.bf16.gmra.mxu0 %v668
  %v1234 = vpop.f32.mrf.mxu0
  %v1235 = vadd.f32 %v1146, %v1234
  %v1236 = vpop.f32.mrf.mxu0
  %v1237 = vadd.f32 %v1148, %v1236
  %1238 = vmatmul.bf16.gmra.mxu0 %v670
  %v1239 = vpop.f32.mrf.mxu0
  %v1240 = vadd.f32 %v1151, %v1239
  %v1241 = vpop.f32.mrf.mxu0
  %v1242 = vadd.f32 %v1153, %v1241
  %1243 = vmatmul.bf16.gmra.mxu0 %v672
  %v1244 = vpop.f32.mrf.mxu0
  %v1245 = vadd.f32 %v1156, %v1244
  %v1246 = vpop.f32.mrf.mxu0
  %v1247 = vadd.f32 %v1158, %v1246
  %1248 = vmatmul.bf16.gmra.mxu0 %v674
  %v1249 = vpop.f32.mrf.mxu0
  %v1250 = vadd.f32 %v1161, %v1249
  %v1251 = vpop.f32.mrf.mxu0
  %v1252 = vadd.f32 %v1163, %v1251
  %1253 = vmatmul.bf16.gmra.mxu0 %v676
  %v1254 = vpop.f32.mrf.mxu0
  %v1255 = vadd.f32 %v1166, %v1254
  %v1256 = vpop.f32.mrf.mxu0
  %v1257 = vadd.f32 %v1168, %v1256
  %1258 = vmatmul.bf16.gmra.mxu0 %v678
  %v1259 = vpop.f32.mrf.mxu0
  %v1260 = vadd.f32 %v1171, %v1259
  %v1261 = vpop.f32.mrf.mxu0
  %v1262 = vadd.f32 %v1173, %v1261
  %1263 = vmatmul.bf16.gmra.mxu0 %v680
  %v1264 = vpop.f32.mrf.mxu0
  %v1265 = vadd.f32 %v1176, %v1264
  %v1266 = vpop.f32.mrf.mxu0
  %v1267 = vadd.f32 %v1178, %v1266
  %1268 = vmatmul.bf16.gmra.mxu0 %v682
  %v1269 = vpop.f32.mrf.mxu0
  %v1270 = vadd.f32 %v1181, %v1269
  %v1271 = vpop.f32.mrf.mxu0
  %v1272 = vadd.f32 %v1183, %v1271
  %1273 = vmatmul.bf16.gmra.mxu0 %v684
  %v1274 = vpop.f32.mrf.mxu0
  %v1275 = vadd.f32 %v1186, %v1274
  %v1276 = vpop.f32.mrf.mxu0
  %v1277 = vadd.f32 %v1188, %v1276
  %1278 = vmatmul.bf16.gmra.mxu0 %v686
  %v1279 = vpop.f32.mrf.mxu0
  %v1280 = vadd.f32 %v1191, %v1279
  %v1281 = vpop.f32.mrf.mxu0
  %v1282 = vadd.f32 %v1193, %v1281
  %1283 = vmatmul.bf16.gmra.mxu0 %v688
  %v1284 = vpop.f32.mrf.mxu0
  %v1285 = vadd.f32 %v1196, %v1284
  %v1286 = vpop.f32.mrf.mxu0
  %v1287 = vadd.f32 %v1198, %v1286
  %1288 = vmatmul.bf16.gmra.mxu0 %v690
  %v1289 = vpop.f32.mrf.mxu0
  %v1290 = vadd.f32 %v1201, %v1289
  %v1291 = vpop.f32.mrf.mxu0
  %v1292 = vadd.f32 %v1203, %v1291
  %1293 = vmatmul.bf16.gmra.mxu0 %v692
  %v1294 = vpop.f32.mrf.mxu0
  %v1295 = vadd.f32 %v1206, %v1294
  %v1296 = vpop.f32.mrf.mxu0
  %v1297 = vadd.f32 %v1208, %v1296
  %1298 = vmatmul.bf16.gmra.mxu0 %v694
  %v1299 = vpop.f32.mrf.mxu0
  %v1300 = vadd.f32 %v1211, %v1299
  %v1301 = vpop.f32.mrf.mxu0
  %v1302 = vadd.f32 %v1213, %v1301
  %1303 = vdwg.mxu0
  %1304 = vst [vmem:[%s8] sm:$0xff] %v1225
  %1305 = vst [vmem:[%s8 + $0x8] sm:$0xff] %v1227
  %1306 = vst [vmem:[%s8 + $0x10] sm:$0xff] %v1230
  %1307 = vst [vmem:[%s8 + $0x18] sm:$0xff] %v1232
  %1308 = vst [vmem:[%s8 + $0x20] sm:$0xff] %v1235
  %1309 = vst [vmem:[%s8 + $0x28] sm:$0xff] %v1237
  %1310 = vst [vmem:[%s8 + $0x30] sm:$0xff] %v1240
  %1311 = vst [vmem:[%s8 + $0x38] sm:$0xff] %v1242
  %1312 = vst [vmem:[%s8 + $0x40] sm:$0xff] %v1245
  %1313 = vst [vmem:[%s8 + $0x48] sm:$0xff] %v1247
  %1314 = vst [vmem:[%s8 + $0x50] sm:$0xff] %v1250
  %1315 = vst [vmem:[%s8 + $0x58] sm:$0xff] %v1252
  %1316 = vst [vmem:[%s8 + $0x60] sm:$0xff] %v1255
  %1317 = vst [vmem:[%s8 + $0x68] sm:$0xff] %v1257
  %1318 = vst [vmem:[%s8 + $0x70] sm:$0xff] %v1260
  %1319 = vst [vmem:[%s8 + $0x78] sm:$0xff] %v1262
  %1320 = vst [vmem:[%s8 + $0x80] sm:$0xff] %v1265
  %1321 = vst [vmem:[%s8 + $0x88] sm:$0xff] %v1267
  %1322 = vst [vmem:[%s8 + $0x90] sm:$0xff] %v1270
  %1323 = vst [vmem:[%s8 + $0x98] sm:$0xff] %v1272
  %1324 = vst [vmem:[%s8 + $0xa0] sm:$0xff] %v1275
  %1325 = vst [vmem:[%s8 + $0xa8] sm:$0xff] %v1277
  %1326 = vst [vmem:[%s8 + $0xb0] sm:$0xff] %v1280
  %1327 = vst [vmem:[%s8 + $0xb8] sm:$0xff] %v1282
  %1328 = vst [vmem:[%s8 + $0xc0] sm:$0xff] %v1285
  %1329 = vst [vmem:[%s8 + $0xc8] sm:$0xff] %v1287
  %1330 = vst [vmem:[%s8 + $0xd0] sm:$0xff] %v1290
  %1331 = vst [vmem:[%s8 + $0xd8] sm:$0xff] %v1292
  %1332 = vst [vmem:[%s8 + $0xe0] sm:$0xff] %v1295
  %1333 = vst [vmem:[%s8 + $0xe8] sm:$0xff] %v1297
  %1334 = vst [vmem:[%s8 + $0xf0] sm:$0xff] %v1300
  %1335 = vst [vmem:[%s8 + $0xf8] sm:$0xff] %v1302
  // Predicated region
  $region34: #{gnn_forward.1} parent=0 // pred_check
    _
  $region35: #{gnn_forward.1} parent=0 // pred_check_branch
    %1337 = sbr.rel (0) target = $region37
  $region36: #{gnn_forward.1} parent=0 // pred_region
    _
  $region37: #{gnn_forward.1} parent=0 // pred_fallthru
    _
  // Predicated region
  $region38: #{gnn_forward.1} parent=0 // pred_check
    _
  $region39: #{gnn_forward.1} parent=0 // pred_check_branch
    %1339 = sbr.rel (0) target = $region41
  $region40: #{gnn_forward.1} parent=0 // pred_region
    _
  $region41: #{gnn_forward.1} parent=0 // pred_fallthru
    _

</llo_original>
